<compile_context>
chip_gen: v7x
topology: tpu7x:2x2x1
jax: 0.10.0
libtpu: 0.0.40
codegen_flags: <defaults>
</compile_context>

<pallas_src>
import functools

import jax
import jax.numpy as jnp
import numpy as np
from jax.experimental import pallas as pl
from jax.experimental.pallas import tpu as pltpu


# ----------------------------------------------------------------------------
# Kernel
# ----------------------------------------------------------------------------
def _critic_kernel(s_ref, a_ref, w_ref, aux_ref, q_ref, *, sd, ad, H):
    """Fused twin-Q MLP.

    Weight slab `w_ref` (compute dtype, width 2H):
        rows [0:H]        -> [ W2a | W2b ]        (dense, side by side)
        rows [H:H+sd]     -> layer-1 state rows   (both heads, width 2H)
        rows [H+sd:+ad]   -> layer-1 action rows  (both heads, width 2H)
    Aux slab `aux_ref` (float32, (4, 2H)):
        row 0 -> b1 (both heads)   row 1 -> b2 (both heads)
        row 2 -> [ w3a_row | w3b_row ]   row 3 -> [b3a, b3b, 0, ...]
    """
    cdt = w_ref.dtype

    s = s_ref[...].astype(cdt)                      # (block_b, sd)
    a = a_ref[...].astype(cdt)                      # (block_b, ad)

    w1s = w_ref[H:H + sd, :]                        # (sd, 2H)
    w1a = w_ref[H + sd:H + sd + ad, :]              # (ad, 2H)
    w2a = w_ref[0:H, 0:H]                           # (H, H)
    w2b = w_ref[0:H, H:]                            # (H, H)

    b1 = aux_ref[0:1, :]                            # (1, 2H) f32
    b2a = aux_ref[1:2, 0:H]
    b2b = aux_ref[1:2, H:]
    w3a = aux_ref[2:3, 0:H]                         # (1, H) f32
    w3b = aux_ref[2:3, H:]
    b3 = aux_ref[3:4, 0:2]                          # (1, 2) f32

    # Layer 1: fused concat (state/action matmuls summed) + both heads (N = 2H).
    z1 = (jnp.dot(s, w1s, preferred_element_type=jnp.float32)
          + jnp.dot(a, w1a, preferred_element_type=jnp.float32)
          + b1)
    h1 = jnp.maximum(z1, 0.0)                       # (block_b, 2H) f32

    # Layer 2: two dense (H, H) matmuls (no zero-padded block-diagonal work).
    h1a = h1[:, 0:H].astype(cdt)
    h1b = h1[:, H:].astype(cdt)
    h2a = jnp.maximum(
        jnp.dot(h1a, w2a, preferred_element_type=jnp.float32) + b2a, 0.0)
    h2b = jnp.maximum(
        jnp.dot(h1b, w2b, preferred_element_type=jnp.float32) + b2b, 0.0)

    # Layer 3 off the MXU: VPU multiply + lane reduce per head, all in f32.
    q1 = jnp.sum(h2a * w3a, axis=-1, keepdims=True)   # (block_b, 1)
    q2 = jnp.sum(h2b * w3b, axis=-1, keepdims=True)
    q_ref[...] = (jnp.concatenate([q1, q2], axis=1) + b3).astype(q_ref.dtype)


# ----------------------------------------------------------------------------
# Parameter construction / packing
# ----------------------------------------------------------------------------
def init_linear(key, fan_in, fan_out):
    """Mimics PyTorch nn.Linear default init: U(-1/sqrt(fan_in), 1/sqrt(fan_in))."""
    kw, kb = jax.random.split(key)
    bound = 1.0 / np.sqrt(fan_in)
    w = jax.random.uniform(kw, (fan_in, fan_out), jnp.float32, -bound, bound)
    b = jax.random.uniform(kb, (1, fan_out), jnp.float32, -bound, bound)
    return w, b


def init_critic_params(key, state_dim, action_dim, hidden=256):
    """Raw (PyTorch-layout) parameters: two independent 3-layer MLP heads."""
    in_dim = state_dim + action_dim
    keys = jax.random.split(key, 6)
    w1a, b1a = init_linear(keys[0], in_dim, hidden)
    w2a, b2a = init_linear(keys[1], hidden, hidden)
    w3a, b3a = init_linear(keys[2], hidden, 1)
    w1b, b1b = init_linear(keys[3], in_dim, hidden)
    w2b, b2b = init_linear(keys[4], hidden, hidden)
    w3b, b3b = init_linear(keys[5], hidden, 1)
    return (w1a, b1a, w2a, b2a, w3a, b3a,
            w1b, b1b, w2b, b2b, w3b, b3b)


def pack_critic_params(params, state_dim, compute_dtype=jnp.bfloat16):
    """Pack the 12 raw tensors into 2 kernel-friendly slabs (done once)."""
    (w1a_, b1a, w2a, b2a, w3a, b3a,
     w1b_, b1b, w2b, b2b, w3b, b3b) = params
    hidden = w1a_.shape[1]

    # Layer 1: both heads side by side (width 2H); state rows / action rows kept
    # in separate row-bands of the slab so the kernel can skip the host concat.
    w1 = jnp.concatenate([w1a_, w1b_], axis=1)          # (sd+ad, 2H)
    w1_state = w1[:state_dim]
    w1_action = w1[state_dim:]

    # Layer 2: dense W2a | W2b side by side (H, 2H) -- no zero blocks.
    w2 = jnp.concatenate([w2a, w2b], axis=1)            # (H, 2H)

    # Single compute-dtype weight slab: W2 first (aligned), then layer-1 rows.
    w_slab = jnp.concatenate([w2, w1_state, w1_action], axis=0).astype(compute_dtype)

    # f32 aux slab (4, 2H): biases + layer-3 row vectors + final biases.
    b1 = jnp.concatenate([b1a, b1b], axis=1)
    b2 = jnp.concatenate([b2a, b2b], axis=1)
    w3_row = jnp.concatenate([w3a.T, w3b.T], axis=1)     # (1, 2H)
    b3_row = (jnp.zeros((1, 2 * hidden), jnp.float32)
              .at[0, 0].set(b3a[0, 0]).at[0, 1].set(b3b[0, 0]))
    aux = jnp.concatenate([b1, b2, w3_row, b3_row], axis=0).astype(jnp.float32)

    return w_slab, aux


# ----------------------------------------------------------------------------
# Forward wrapper
# ----------------------------------------------------------------------------
def _default_block_b(B):
    """One grid step on single-TC chips; one step per TensorCore on v7x."""
    try:
        kind = jax.devices()[0].device_kind.lower()
    except Exception:  # pragma: no cover - detection failure -> single step
        kind = ""
    if "v7" in kind and B >= 16 and B % 16 == 0:
        return B // 2
    return B


@functools.partial(jax.jit, static_argnames=("block_b",))
def critic_forward(state, action, packed_params, block_b=None):
    """Returns (q1, q2), each (B, 1), matching the PyTorch Critic.forward."""
    w_slab, aux = packed_params
    B, sd = state.shape
    ad = action.shape[1]
    H2 = w_slab.shape[1]
    H = H2 // 2
    if w_slab.shape[0] != H + sd + ad:
        raise ValueError("packed weight slab does not match state/action dims")

    if block_b is None:
        block_b = _default_block_b(B)
    if B % block_b != 0:
        raise ValueError(f"block_b={block_b} must divide batch size B={B}")
    if block_b != B and block_b % 8 != 0:
        raise ValueError(f"block_b={block_b} must be a multiple of 8 (or equal B)")
    grid = (B // block_b,)

    # Dense flop / byte counts (zero-padded blocks are gone).
    flops = 2 * B * ((sd + ad) * H2 + 2 * H * H + H2)
    bytes_accessed = int(
        state.size * state.dtype.itemsize
        + action.size * action.dtype.itemsize
        + B * 2 * 4
        + w_slab.size * w_slab.dtype.itemsize
        + aux.size * aux.dtype.itemsize)

    kernel = functools.partial(_critic_kernel, sd=sd, ad=ad, H=H)

    q = pl.pallas_call(
        kernel,
        out_shape=jax.ShapeDtypeStruct((B, 2), jnp.float32),
        grid_spec=pltpu.PrefetchScalarGridSpec(
            num_scalar_prefetch=0,
            grid=grid,
            in_specs=[
                pl.BlockSpec((block_b, sd), lambda i: (i, 0)),
                pl.BlockSpec((block_b, ad), lambda i: (i, 0)),
                # Weight / aux slabs stay VMEM-resident across all grid steps.
                pl.BlockSpec(w_slab.shape, lambda i: (0, 0)),
                pl.BlockSpec(aux.shape, lambda i: (0, 0)),
            ],
            out_specs=pl.BlockSpec((block_b, 2), lambda i: (i, 0)),
        ),
        compiler_params=pltpu.CompilerParams(
            dimension_semantics=("parallel",)),
        cost_estimate=pl.CostEstimate(
            flops=int(flops), transcendentals=0, bytes_accessed=bytes_accessed),
    )(state, action, w_slab, aux)

    return q[:, 0:1], q[:, 1:2]


# ----------------------------------------------------------------------------
# Pure-JAX reference (PyTorch semantics, unpacked params)
# ----------------------------------------------------------------------------
def critic_forward_ref(state, action, params):
    (w1a, b1a, w2a, b2a, w3a, b3a,
     w1b, b1b, w2b, b2b, w3b, b3b) = params
    sa = jnp.concatenate([state, action], axis=1)

    def mlp(w1, b1, w2, b2, w3, b3):
        h = jnp.maximum(sa @ w1 + b1, 0.0)
        h = jnp.maximum(h @ w2 + b2, 0.0)
        return h @ w3 + b3

    return (mlp(w1a, b1a, w2a, b2a, w3a, b3a),
            mlp(w1b, b1b, w2b, b2b, w3b, b3b))


# ----------------------------------------------------------------------------
# Demo / correctness check
# ----------------------------------------------------------------------------
if __name__ == "__main__":
    key = jax.random.PRNGKey(0)
    k_param, k_s1, k_a1, k_s2, k_a2 = jax.random.split(key, 5)

    state_dim, action_dim = 16, 4
    raw_params = init_critic_params(k_param, state_dim, action_dim)

    # --- small batch, f32 weights: tight semantic check ------------------
    B = 8
    state = jax.random.normal(k_s1, (B, state_dim), jnp.float32)
    action = jax.random.normal(k_a1, (B, action_dim), jnp.float32)

    packed_f32 = pack_critic_params(raw_params, state_dim, jnp.float32)
    q1, q2 = critic_forward(state, action, packed_f32)
    jax.block_until_ready((q1, q2))

    q1_ref, q2_ref = critic_forward_ref(state, action, raw_params)
    np.testing.assert_allclose(np.asarray(q1), np.asarray(q1_ref), rtol=1e-4, atol=1e-4)
    np.testing.assert_allclose(np.asarray(q2), np.asarray(q2_ref), rtol=1e-4, atol=1e-4)

    # --- training-size batch, default bf16 fast path ----------------------
    B2 = 256
    state2 = jax.random.normal(k_s2, (B2, state_dim), jnp.float32)
    action2 = jax.random.normal(k_a2, (B2, action_dim), jnp.float32)

    packed_bf16 = pack_critic_params(raw_params, state_dim)  # bf16 default
    q1b, q2b = critic_forward(state2, action2, packed_bf16)
    jax.block_until_ready((q1b, q2b))

    q1b_ref, q2b_ref = critic_forward_ref(state2, action2, raw_params)
    np.testing.assert_allclose(np.asarray(q1b), np.asarray(q1b_ref), rtol=5e-2, atol=5e-2)
    np.testing.assert_allclose(np.asarray(q2b), np.asarray(q2b_ref), rtol=5e-2, atol=5e-2)

    print("KERNEL_OK")
</pallas_src>

<mosaic_0001>
module attributes {stable_mosaic.version = 11 : i64} {
  func.func @_critic_kernel(%arg0: i32, %arg1: memref<8x16xf32, #tpu.memory_space<vmem>>, %arg2: memref<8x4xf32, #tpu.memory_space<vmem>>, %arg3: memref<276x512xf32, #tpu.memory_space<vmem>>, %arg4: memref<4x512xf32, #tpu.memory_space<vmem>>, %arg5: memref<8x2xf32, #tpu.memory_space<vmem>>) attributes {dimension_semantics = [#tpu.dimension_semantics<parallel>], iteration_bounds = array<i64: 1>, scalar_prefetch = 0 : i64, scratch_operands = 0 : i64, tpu.core_type = #tpu.core_type<tc>, window_params = [{transform_indices = @transform_0, window_bounds = array<i64: 8, 16>}, {transform_indices = @transform_1, window_bounds = array<i64: 8, 4>}, {pipeline_mode = #tpu.pipeline_mode<synchronous>, transform_indices = @transform_2, window_bounds = array<i64: 276, 512>}, {pipeline_mode = #tpu.pipeline_mode<synchronous>, transform_indices = @transform_3, window_bounds = array<i64: 4, 512>}, {transform_indices = @transform_4, window_bounds = array<i64: 8, 2>}]} {
    %c0 = arith.constant 0 : index
    %c0_0 = arith.constant 0 : index
    %0 = vector.load %arg1[%c0, %c0_0] : memref<8x16xf32, #tpu.memory_space<vmem>>, vector<8x16xf32>
    %c0_1 = arith.constant 0 : index
    %c0_2 = arith.constant 0 : index
    %1 = vector.load %arg2[%c0_1, %c0_2] : memref<8x4xf32, #tpu.memory_space<vmem>>, vector<8x4xf32>
    %c256 = arith.constant 256 : index
    %c0_3 = arith.constant 0 : index
    %2 = vector.load %arg3[%c256, %c0_3] : memref<276x512xf32, #tpu.memory_space<vmem>>, vector<16x512xf32>
    %c272 = arith.constant 272 : index
    %c0_4 = arith.constant 0 : index
    %3 = vector.load %arg3[%c272, %c0_4] : memref<276x512xf32, #tpu.memory_space<vmem>>, vector<4x512xf32>
    %c0_5 = arith.constant 0 : index
    %c0_6 = arith.constant 0 : index
    %4 = vector.load %arg3[%c0_5, %c0_6] : memref<276x512xf32, #tpu.memory_space<vmem>>, vector<256x256xf32>
    %c0_7 = arith.constant 0 : index
    %c256_8 = arith.constant 256 : index
    %5 = vector.load %arg3[%c0_7, %c256_8] : memref<276x512xf32, #tpu.memory_space<vmem>>, vector<256x256xf32>
    %c0_9 = arith.constant 0 : index
    %c0_10 = arith.constant 0 : index
    %6 = vector.load %arg4[%c0_9, %c0_10] : memref<4x512xf32, #tpu.memory_space<vmem>>, vector<1x512xf32>
    %c1 = arith.constant 1 : index
    %c0_11 = arith.constant 0 : index
    %7 = vector.load %arg4[%c1, %c0_11] : memref<4x512xf32, #tpu.memory_space<vmem>>, vector<1x256xf32>
    %c1_12 = arith.constant 1 : index
    %c256_13 = arith.constant 256 : index
    %8 = vector.load %arg4[%c1_12, %c256_13] : memref<4x512xf32, #tpu.memory_space<vmem>>, vector<1x256xf32>
    %c2 = arith.constant 2 : index
    %c0_14 = arith.constant 0 : index
    %9 = vector.load %arg4[%c2, %c0_14] : memref<4x512xf32, #tpu.memory_space<vmem>>, vector<1x256xf32>
    %c2_15 = arith.constant 2 : index
    %c256_16 = arith.constant 256 : index
    %10 = vector.load %arg4[%c2_15, %c256_16] : memref<4x512xf32, #tpu.memory_space<vmem>>, vector<1x256xf32>
    %c3 = arith.constant 3 : index
    %c0_17 = arith.constant 0 : index
    %11 = vector.load %arg4[%c3, %c0_17] : memref<4x512xf32, #tpu.memory_space<vmem>>, vector<1x2xf32>
    %cst = arith.constant dense<0.000000e+00> : vector<8x512xf32>
    %12 = tpu.matmul %0, %2, %cst {dimension_numbers = #tpu.dot_dimension_numbers<[1], [0], [0], [1], [0, 0, 1, 1], [], []>} : vector<8x16xf32>, vector<16x512xf32>, vector<8x512xf32> -> vector<8x512xf32>
    %cst_18 = arith.constant dense<0.000000e+00> : vector<8x512xf32>
    %13 = tpu.matmul %1, %3, %cst_18 {dimension_numbers = #tpu.dot_dimension_numbers<[1], [0], [0], [1], [0, 0, 1, 1], [], []>} : vector<8x4xf32>, vector<4x512xf32>, vector<8x512xf32> -> vector<8x512xf32>
    %14 = arith.addf %12, %13 : vector<8x512xf32>
    %15 = vector.broadcast %6 : vector<1x512xf32> to vector<8x512xf32>
    %16 = arith.addf %14, %15 : vector<8x512xf32>
    %cst_19 = arith.constant 0.000000e+00 : f32
    %17 = vector.broadcast %cst_19 : f32 to vector<8x512xf32>
    %18 = arith.maximumf %16, %17 : vector<8x512xf32>
    %19 = vector.extract_strided_slice %18 {offsets = [0, 0], sizes = [8, 256], strides = [1, 1]} : vector<8x512xf32> to vector<8x256xf32>
    %20 = vector.extract_strided_slice %18 {offsets = [0, 256], sizes = [8, 256], strides = [1, 1]} : vector<8x512xf32> to vector<8x256xf32>
    %cst_20 = arith.constant dense<0.000000e+00> : vector<8x256xf32>
    %21 = tpu.matmul %19, %4, %cst_20 {dimension_numbers = #tpu.dot_dimension_numbers<[1], [0], [0], [1], [0, 0, 1, 1], [], []>} : vector<8x256xf32>, vector<256x256xf32>, vector<8x256xf32> -> vector<8x256xf32>
    %22 = vector.broadcast %7 : vector<1x256xf32> to vector<8x256xf32>
    %23 = arith.addf %21, %22 : vector<8x256xf32>
    %cst_21 = arith.constant 0.000000e+00 : f32
    %24 = vector.broadcast %cst_21 : f32 to vector<8x256xf32>
    %25 = arith.maximumf %23, %24 : vector<8x256xf32>
    %cst_22 = arith.constant dense<0.000000e+00> : vector<8x256xf32>
    %26 = tpu.matmul %20, %5, %cst_22 {dimension_numbers = #tpu.dot_dimension_numbers<[1], [0], [0], [1], [0, 0, 1, 1], [], []>} : vector<8x256xf32>, vector<256x256xf32>, vector<8x256xf32> -> vector<8x256xf32>
    %27 = vector.broadcast %8 : vector<1x256xf32> to vector<8x256xf32>
    %28 = arith.addf %26, %27 : vector<8x256xf32>
    %cst_23 = arith.constant 0.000000e+00 : f32
    %29 = vector.broadcast %cst_23 : f32 to vector<8x256xf32>
    %30 = arith.maximumf %28, %29 : vector<8x256xf32>
    %31 = vector.broadcast %9 : vector<1x256xf32> to vector<8x256xf32>
    %32 = arith.mulf %25, %31 : vector<8x256xf32>
    %cst_24 = arith.constant dense<0.000000e+00> : vector<8xf32>
    %33 = vector.multi_reduction <add>, %32, %cst_24 [1] : vector<8x256xf32> to vector<8xf32>
    %34 = vector.shape_cast %33 : vector<8xf32> to vector<8x1xf32>
    %35 = vector.broadcast %10 : vector<1x256xf32> to vector<8x256xf32>
    %36 = arith.mulf %30, %35 : vector<8x256xf32>
    %cst_25 = arith.constant dense<0.000000e+00> : vector<8xf32>
    %37 = vector.multi_reduction <add>, %36, %cst_25 [1] : vector<8x256xf32> to vector<8xf32>
    %38 = vector.shape_cast %37 : vector<8xf32> to vector<8x1xf32>
    %39 = tpu.concatenate %34, %38 in 1 : vector<8x1xf32>, vector<8x1xf32> -> vector<8x2xf32>
    %40 = vector.broadcast %11 : vector<1x2xf32> to vector<8x2xf32>
    %41 = arith.addf %39, %40 : vector<8x2xf32>
    %c0_26 = arith.constant 0 : index
    %c0_27 = arith.constant 0 : index
    %42 = vector.load %arg5[%c0_26, %c0_27] : memref<8x2xf32, #tpu.memory_space<vmem>>, vector<8x2xf32>
    tpu.vector_store %arg5[%c0_26, %c0_27], %41 {strides = array<i32>} : memref<8x2xf32, #tpu.memory_space<vmem>>, vector<8x2xf32>,
    return
  }
  func.func @transform_0(%arg0: i32) -> (i32, i32) {
    %c0_i32 = arith.constant 0 : i32
    %c0_i32_0 = arith.constant 0 : i32
    return %arg0, %c0_i32 : i32, i32
  }
  func.func @transform_1(%arg0: i32) -> (i32, i32) {
    %c0_i32 = arith.constant 0 : i32
    %c0_i32_0 = arith.constant 0 : i32
    return %arg0, %c0_i32 : i32, i32
  }
  func.func @transform_2(%arg0: i32) -> (i32, i32) {
    %c0_i32 = arith.constant 0 : i32
    %c0_i32_0 = arith.constant 0 : i32
    %c0_i32_1 = arith.constant 0 : i32
    return %c0_i32, %c0_i32_0 : i32, i32
  }
  func.func @transform_3(%arg0: i32) -> (i32, i32) {
    %c0_i32 = arith.constant 0 : i32
    %c0_i32_0 = arith.constant 0 : i32
    %c0_i32_1 = arith.constant 0 : i32
    return %c0_i32, %c0_i32_0 : i32, i32
  }
  func.func @transform_4(%arg0: i32) -> (i32, i32) {
    %c0_i32 = arith.constant 0 : i32
    %c0_i32_0 = arith.constant 0 : i32
    return %arg0, %c0_i32 : i32, i32
  }
}

</mosaic_0001>

<llo_original>
// kernel: critic_forward.1
$region0: #{critic_forward.1}
  #allocation0 [shape = 'u32[]', space=smem, size = 0x4, offset = 0x4, fixed_abs, tag = 'smem constant byte address 0x4 - core index']
  #allocation1 [shape = 'u32[144,128]{1,0:T(1,128)}', space=vmem, size = 0x12000, scoped, tag = 'internal scratch']
  %s0 = inlined_call_operand.hbm [shape: f32[8,16], index: 0, kind: input, shape index: {}]
  %s1 = inlined_call_operand.vmem [shape: f32[8,4], index: 1, kind: input, shape index: {}]
  %s2 = inlined_call_operand.hbm [shape: f32[276,512], index: 2, kind: input, shape index: {}]
  %s3 = inlined_call_operand.vmem [shape: f32[4,512], index: 3, kind: input, shape index: {}]
  %s4 = inlined_call_operand.vmem [shape: f32[8,2], index: 4, kind: output, shape index: {}]
  %s5 = sld [smem:[#allocation0]]
  $region34: #{critic_forward.1} parent=0
    _
  %s7 = ssub.s32 1, %s5
  %s8 = scalar_select 0, %s7, %s5
  $region1: #{critic_forward.1} parent=0
    #allocation2 [shape = 'u8[4096]{0}', space=vmem, size = 0x1000, scoped, tag = 'input window, operand 0, single buffered']
    #allocation3 [shape = 's32[1]{0}', space=sflag, size = 0x4, scoped, tag = 'scoped memory for critic_forward.1']
    #allocation4 [shape = 'u8[573440]{0}', space=vmem, size = 0x8c000, scoped, tag = 'input window, operand 2, single buffered']
    #allocation5 [shape = 's32[1]{0}', space=sflag, size = 0x4, scoped, tag = 'scoped memory for critic_forward.1']
    %9 = vsyncpa [#allocation3], 0
    %10 = vsyncpa [#allocation5], 0
    // Predicated region
    $region2: #{critic_forward.1} parent=1 // pred_check
      _
    $region3: #{critic_forward.1} parent=1 // pred_check_branch
      %12 = sbr.rel (0) target = $region5
    $region4: #{critic_forward.1} parent=1 // pred_region
      %s14 = ssub.s32 128, 128
      %15 = vsyncadd [#allocation3], %s14
      %s17 = sshll.u32 [#allocation2], 4
      %s18 = int_to_ptr.vmem [resolvable:$true] %s17
      %20 = dma.hbm_to_vmem [thread:$0]  %s0, 128, %s18, [#allocation3]
    $region5: #{critic_forward.1} parent=1 // pred_fallthru
      _
    // Predicated region
    $region6: #{critic_forward.1} parent=1 // pred_check
      _
    $region7: #{critic_forward.1} parent=1 // pred_check_branch
      %22 = sbr.rel (0) target = $region9
    $region8: #{critic_forward.1} parent=1 // pred_region
      _
    $region9: #{critic_forward.1} parent=1 // pred_fallthru
      _
    // Predicated region
    $region10: #{critic_forward.1} parent=1 // pred_check
      _
    $region11: #{critic_forward.1} parent=1 // pred_check_branch
      %24 = sbr.rel (0) target = $region13
    $region12: #{critic_forward.1} parent=1 // pred_region
      %s26 = ssub.s32 17920, 17920
      %27 = vsyncadd [#allocation5], %s26
      %s28 = sshll.u32 [#allocation4], 4
      %s29 = int_to_ptr.vmem [resolvable:$true] %s28
      %34 = dma.hbm_to_vmem [thread:$0]  %s2, 17920, %s29, [#allocation5], 512, 512, 32
    $region13: #{critic_forward.1} parent=1 // pred_fallthru
      _
    // Predicated region
    $region14: #{critic_forward.1} parent=1 // pred_check
      _
    $region15: #{critic_forward.1} parent=1 // pred_check_branch
      %36 = sbr.rel (0) target = $region17
    $region16: #{critic_forward.1} parent=1 // pred_region
      _
    $region17: #{critic_forward.1} parent=1 // pred_fallthru
      _
    // Predicated region
    $region18: #{critic_forward.1} parent=1 // pred_check
      _
    $region19: #{critic_forward.1} parent=1 // pred_check_branch
      %38 = sbr.rel (0) target = $region21
    $region20: #{critic_forward.1} parent=1 // pred_region
      %39 = dma.done [#allocation3], 128
    $region21: #{critic_forward.1} parent=1 // pred_fallthru
      _
    // Predicated region
    $region22: #{critic_forward.1} parent=1 // pred_check
      _
    $region23: #{critic_forward.1} parent=1 // pred_check_branch
      %41 = sbr.rel (0) target = $region25
    $region24: #{critic_forward.1} parent=1 // pred_region
      %42 = dma.done [#allocation5], 17920
    $region25: #{critic_forward.1} parent=1 // pred_fallthru
      _
    %v43 = vld [vmem:[#allocation2] sm:$0xff]
    %v44 = vld [vmem:[%s1] sm:$0xff]
    %v45 = vld [vmem:[#allocation4 + $0x400] sm:$0xff]
    %v46 = vld [vmem:[#allocation4 + $0x408] sm:$0xff]
    %v47 = vld [vmem:[#allocation4 + $0x410] sm:$0xff]
    %v48 = vld [vmem:[#allocation4 + $0x418] sm:$0xff]
    %v49 = vld [vmem:[#allocation4 + $0x420] sm:$0xff]
    %v50 = vld [vmem:[#allocation4 + $0x428] sm:$0xff]
    %v51 = vld [vmem:[#allocation4 + $0x430] sm:$0xff]
    %v52 = vld [vmem:[#allocation4 + $0x438] sm:$0xff]
    %v53 = vld [vmem:[#allocation4 + $0x440] sm:$0xf]
    %v54 = vld [vmem:[#allocation4 + $0x448] sm:$0xf]
    %v55 = vld [vmem:[#allocation4 + $0x450] sm:$0xf]
    %v56 = vld [vmem:[#allocation4 + $0x458] sm:$0xf]
    %v57 = vld [vmem:[#allocation4] sm:$0xff]
    %v58 = vld [vmem:[#allocation4 + $0x8] sm:$0xff]
    %v59 = vld [vmem:[#allocation4 + $0x20] sm:$0xff]
    %v60 = vld [vmem:[#allocation4 + $0x28] sm:$0xff]
    %v61 = vld [vmem:[#allocation4 + $0x40] sm:$0xff]
    %v62 = vld [vmem:[#allocation4 + $0x48] sm:$0xff]
    %v63 = vld [vmem:[#allocation4 + $0x60] sm:$0xff]
    %v64 = vld [vmem:[#allocation4 + $0x68] sm:$0xff]
    %v65 = vld [vmem:[#allocation4 + $0x80] sm:$0xff]
    %v66 = vld [vmem:[#allocation4 + $0x88] sm:$0xff]
    %v67 = vld [vmem:[#allocation4 + $0xa0] sm:$0xff]
    %v68 = vld [vmem:[#allocation4 + $0xa8] sm:$0xff]
    %v69 = vld [vmem:[#allocation4 + $0xc0] sm:$0xff]
    %v70 = vld [vmem:[#allocation4 + $0xc8] sm:$0xff]
    %v71 = vld [vmem:[#allocation4 + $0xe0] sm:$0xff]
    %v72 = vld [vmem:[#allocation4 + $0xe8] sm:$0xff]
    %v73 = vld [vmem:[#allocation4 + $0x100] sm:$0xff]
    %v74 = vld [vmem:[#allocation4 + $0x108] sm:$0xff]
    %v75 = vld [vmem:[#allocation4 + $0x120] sm:$0xff]
    %v76 = vld [vmem:[#allocation4 + $0x128] sm:$0xff]
    %v77 = vld [vmem:[#allocation4 + $0x140] sm:$0xff]
    %v78 = vld [vmem:[#allocation4 + $0x148] sm:$0xff]
    %v79 = vld [vmem:[#allocation4 + $0x160] sm:$0xff]
    %v80 = vld [vmem:[#allocation4 + $0x168] sm:$0xff]
    %v81 = vld [vmem:[#allocation4 + $0x180] sm:$0xff]
    %v82 = vld [vmem:[#allocation4 + $0x188] sm:$0xff]
    %v83 = vld [vmem:[#allocation4 + $0x1a0] sm:$0xff]
    %v84 = vld [vmem:[#allocation4 + $0x1a8] sm:$0xff]
    %v85 = vld [vmem:[#allocation4 + $0x1c0] sm:$0xff]
    %v86 = vld [vmem:[#allocation4 + $0x1c8] sm:$0xff]
    %v87 = vld [vmem:[#allocation4 + $0x1e0] sm:$0xff]
    %v88 = vld [vmem:[#allocation4 + $0x1e8] sm:$0xff]
    %v89 = vld [vmem:[#allocation4 + $0x200] sm:$0xff]
    %v90 = vld [vmem:[#allocation4 + $0x208] sm:$0xff]
    %v91 = vld [vmem:[#allocation4 + $0x220] sm:$0xff]
    %v92 = vld [vmem:[#allocation4 + $0x228] sm:$0xff]
    %v93 = vld [vmem:[#allocation4 + $0x240] sm:$0xff]
    %v94 = vld [vmem:[#allocation4 + $0x248] sm:$0xff]
    %v95 = vld [vmem:[#allocation4 + $0x260] sm:$0xff]
    %v96 = vld [vmem:[#allocation4 + $0x268] sm:$0xff]
    %v97 = vld [vmem:[#allocation4 + $0x280] sm:$0xff]
    %v98 = vld [vmem:[#allocation4 + $0x288] sm:$0xff]
    %v99 = vld [vmem:[#allocation4 + $0x2a0] sm:$0xff]
    %v100 = vld [vmem:[#allocation4 + $0x2a8] sm:$0xff]
    %v101 = vld [vmem:[#allocation4 + $0x2c0] sm:$0xff]
    %v102 = vld [vmem:[#allocation4 + $0x2c8] sm:$0xff]
    %v103 = vld [vmem:[#allocation4 + $0x2e0] sm:$0xff]
    %v104 = vld [vmem:[#allocation4 + $0x2e8] sm:$0xff]
    %v105 = vld [vmem:[#allocation4 + $0x300] sm:$0xff]
    %v106 = vld [vmem:[#allocation4 + $0x308] sm:$0xff]
    %v107 = vld [vmem:[#allocation4 + $0x320] sm:$0xff]
    %v108 = vld [vmem:[#allocation4 + $0x328] sm:$0xff]
    %v109 = vld [vmem:[#allocation4 + $0x340] sm:$0xff]
    %v110 = vld [vmem:[#allocation4 + $0x348] sm:$0xff]
    %v111 = vld [vmem:[#allocation4 + $0x360] sm:$0xff]
    %v112 = vld [vmem:[#allocation4 + $0x368] sm:$0xff]
    %v113 = vld [vmem:[#allocation4 + $0x380] sm:$0xff]
    %v114 = vld [vmem:[#allocation4 + $0x388] sm:$0xff]
    %v115 = vld [vmem:[#allocation4 + $0x3a0] sm:$0xff]
    %v116 = vld [vmem:[#allocation4 + $0x3a8] sm:$0xff]
    %v117 = vld [vmem:[#allocation4 + $0x3c0] sm:$0xff]
    %v118 = vld [vmem:[#allocation4 + $0x3c8] sm:$0xff]
    %v119 = vld [vmem:[#allocation4 + $0x3e0] sm:$0xff]
    %v120 = vld [vmem:[#allocation4 + $0x3e8] sm:$0xff]
    %v121 = vld [vmem:[#allocation4 + $0x10] sm:$0xff]
    %v122 = vld [vmem:[#allocation4 + $0x18] sm:$0xff]
    %v123 = vld [vmem:[#allocation4 + $0x30] sm:$0xff]
    %v124 = vld [vmem:[#allocation4 + $0x38] sm:$0xff]
    %v125 = vld [vmem:[#allocation4 + $0x50] sm:$0xff]
    %v126 = vld [vmem:[#allocation4 + $0x58] sm:$0xff]
    %v127 = vld [vmem:[#allocation4 + $0x70] sm:$0xff]
    %v128 = vld [vmem:[#allocation4 + $0x78] sm:$0xff]
    %v129 = vld [vmem:[#allocation4 + $0x90] sm:$0xff]
    %v130 = vld [vmem:[#allocation4 + $0x98] sm:$0xff]
    %v131 = vld [vmem:[#allocation4 + $0xb0] sm:$0xff]
    %v132 = vld [vmem:[#allocation4 + $0xb8] sm:$0xff]
    %v133 = vld [vmem:[#allocation4 + $0xd0] sm:$0xff]
    %v134 = vld [vmem:[#allocation4 + $0xd8] sm:$0xff]
    %v135 = vld [vmem:[#allocation4 + $0xf0] sm:$0xff]
    %v136 = vld [vmem:[#allocation4 + $0xf8] sm:$0xff]
    %v137 = vld [vmem:[#allocation4 + $0x110] sm:$0xff]
    %v138 = vld [vmem:[#allocation4 + $0x118] sm:$0xff]
    %v139 = vld [vmem:[#allocation4 + $0x130] sm:$0xff]
    %v140 = vld [vmem:[#allocation4 + $0x138] sm:$0xff]
    %v141 = vld [vmem:[#allocation4 + $0x150] sm:$0xff]
    %v142 = vld [vmem:[#allocation4 + $0x158] sm:$0xff]
    %v143 = vld [vmem:[#allocation4 + $0x170] sm:$0xff]
    %v144 = vld [vmem:[#allocation4 + $0x178] sm:$0xff]
    %v145 = vld [vmem:[#allocation4 + $0x190] sm:$0xff]
    %v146 = vld [vmem:[#allocation4 + $0x198] sm:$0xff]
    %v147 = vld [vmem:[#allocation4 + $0x1b0] sm:$0xff]
    %v148 = vld [vmem:[#allocation4 + $0x1b8] sm:$0xff]
    %v149 = vld [vmem:[#allocation4 + $0x1d0] sm:$0xff]
    %v150 = vld [vmem:[#allocation4 + $0x1d8] sm:$0xff]
    %v151 = vld [vmem:[#allocation4 + $0x1f0] sm:$0xff]
    %v152 = vld [vmem:[#allocation4 + $0x1f8] sm:$0xff]
    %v153 = vld [vmem:[#allocation4 + $0x210] sm:$0xff]
    %v154 = vld [vmem:[#allocation4 + $0x218] sm:$0xff]
    %v155 = vld [vmem:[#allocation4 + $0x230] sm:$0xff]
    %v156 = vld [vmem:[#allocation4 + $0x238] sm:$0xff]
    %v157 = vld [vmem:[#allocation4 + $0x250] sm:$0xff]
    %v158 = vld [vmem:[#allocation4 + $0x258] sm:$0xff]
    %v159 = vld [vmem:[#allocation4 + $0x270] sm:$0xff]
    %v160 = vld [vmem:[#allocation4 + $0x278] sm:$0xff]
    %v161 = vld [vmem:[#allocation4 + $0x290] sm:$0xff]
    %v162 = vld [vmem:[#allocation4 + $0x298] sm:$0xff]
    %v163 = vld [vmem:[#allocation4 + $0x2b0] sm:$0xff]
    %v164 = vld [vmem:[#allocation4 + $0x2b8] sm:$0xff]
    %v165 = vld [vmem:[#allocation4 + $0x2d0] sm:$0xff]
    %v166 = vld [vmem:[#allocation4 + $0x2d8] sm:$0xff]
    %v167 = vld [vmem:[#allocation4 + $0x2f0] sm:$0xff]
    %v168 = vld [vmem:[#allocation4 + $0x2f8] sm:$0xff]
    %v169 = vld [vmem:[#allocation4 + $0x310] sm:$0xff]
    %v170 = vld [vmem:[#allocation4 + $0x318] sm:$0xff]
    %v171 = vld [vmem:[#allocation4 + $0x330] sm:$0xff]
    %v172 = vld [vmem:[#allocation4 + $0x338] sm:$0xff]
    %v173 = vld [vmem:[#allocation4 + $0x350] sm:$0xff]
    %v174 = vld [vmem:[#allocation4 + $0x358] sm:$0xff]
    %v175 = vld [vmem:[#allocation4 + $0x370] sm:$0xff]
    %v176 = vld [vmem:[#allocation4 + $0x378] sm:$0xff]
    %v177 = vld [vmem:[#allocation4 + $0x390] sm:$0xff]
    %v178 = vld [vmem:[#allocation4 + $0x398] sm:$0xff]
    %v179 = vld [vmem:[#allocation4 + $0x3b0] sm:$0xff]
    %v180 = vld [vmem:[#allocation4 + $0x3b8] sm:$0xff]
    %v181 = vld [vmem:[#allocation4 + $0x3d0] sm:$0xff]
    %v182 = vld [vmem:[#allocation4 + $0x3d8] sm:$0xff]
    %v183 = vld [vmem:[#allocation4 + $0x3f0] sm:$0xff]
    %v184 = vld [vmem:[#allocation4 + $0x3f8] sm:$0xff]
    %v185 = vld [vmem:[%s3] ss:$4 sm:$0xf]
    %s186 = scalar_lea.vmem %s3, 1
    %v187 = vld [vmem:[%s186] ss:$4 sm:$0x3]
    %s188 = scalar_lea.vmem %s3, 9
    %v189 = vld [vmem:[%s188] ss:$4 sm:$0x3]
    %s190 = scalar_lea.vmem %s3, 2
    %v191 = vld [vmem:[%s190] ss:$4 sm:$0x3]
    %s192 = scalar_lea.vmem %s3, 10
    %v193 = vld [vmem:[%s192] ss:$4 sm:$0x3]
    %v194 = vld [vmem:[%s3 + $0x3] sm:$0x1]
    %vm195 = vcmask 31744
    %v197 = vsel %vm195, %v44, 0
    %vm199 = vcmask 1043456
    %v201 = vsel %vm199, %v53, 0
    %v204 = vsel %vm199, %v54, 0
    %v207 = vsel %vm199, %v55, 0
    %v210 = vsel %vm199, %v56, 0
    %212 = vmatprep.subr.mxu0 %v204
    %213 = vmatpush1.msra.mxu0 %v201
    %214 = vmatprep.subr.mxu0 0.0
    %215 = vmatpush1.msra.mxu0 0.0
    %216 = vmatprep.subr.mxu0 0.0
    %217 = vmatpush1.msra.mxu0 0.0
    %218 = vmatprep.subr.mxu0 0.0
    %219 = vmatpush1.msra.mxu0 0.0
    %220 = vmatprep.subr.mxu0 0.0
    %221 = vmatpush1.msra.mxu0 0.0
    %222 = vmatprep.subr.mxu0 0.0
    %223 = vmatpush1.msra.mxu0 0.0
    %224 = vmatprep.subr.mxu0 0.0
    %225 = vmatpush1.msra.mxu0 0.0
    %226 = vmatprep.subr.mxu0 0.0
    %227 = vmatpush1.msra.mxu0 0.0
    %228 = vmatprep.subr.mxu0 0.0
    %229 = vmatpush1.msra.mxu0 0.0
    %230 = vmatprep.subr.mxu0 0.0
    %231 = vmatpush1.msra.mxu0 0.0
    %232 = vmatprep.subr.mxu0 0.0
    %233 = vmatpush1.msra.mxu0 0.0
    %234 = vmatprep.subr.mxu0 0.0
    %235 = vmatpush1.msra.mxu0 0.0
    %236 = vmatprep.subr.mxu0 0.0
    %237 = vmatpush1.msra.mxu0 0.0
    %238 = vmatprep.subr.mxu0 0.0
    %239 = vmatpush1.msra.mxu0 0.0
    %240 = vmatprep.subr.mxu0 0.0
    %241 = vmatpush1.msra.mxu0 0.0
    %242 = vmatprep.subr.mxu0 0.0
    %243 = vmatpush1.msra.mxu0 0.0
    %244 = vmatprep.subr.mxu0 0.0
    %245 = vmatpush1.msra.mxu0 0.0
    %246 = vmatprep.subr.mxu0 0.0
    %247 = vmatpush1.msra.mxu0 0.0
    %248 = vmatprep.subr.mxu0 0.0
    %249 = vmatpush1.msra.mxu0 0.0
    %250 = vmatprep.subr.mxu0 0.0
    %251 = vmatpush1.msra.mxu0 0.0
    %252 = vmatprep.subr.mxu0 0.0
    %253 = vmatpush1.msra.mxu0 0.0
    %254 = vmatprep.subr.mxu0 0.0
    %255 = vmatpush1.msra.mxu0 0.0
    %256 = vmatprep.subr.mxu0 0.0
    %257 = vmatpush1.msra.mxu0 0.0
    %258 = vmatprep.subr.mxu0 0.0
    %259 = vmatpush1.msra.mxu0 0.0
    %260 = vmatprep.subr.mxu0 0.0
    %261 = vmatpush1.msra.mxu0 0.0
    %262 = vmatprep.subr.mxu0 0.0
    %263 = vmatpush1.msra.mxu0 0.0
    %264 = vmatprep.subr.mxu0 0.0
    %265 = vmatpush1.msra.mxu0 0.0
    %266 = vmatprep.subr.mxu0 0.0
    %267 = vmatpush1.msra.mxu0 0.0
    %268 = vmatprep.subr.mxu0 0.0
    %269 = vmatpush1.msra.mxu0 0.0
    %270 = vmatprep.subr.mxu0 0.0
    %271 = vmatpush1.msra.mxu0 0.0
    %272 = vmatprep.subr.mxu0 0.0
    %273 = vmatpush1.msra.mxu0 0.0
    %274 = vmatprep.subr.mxu0 0.0
    %275 = vmatpush1.msra.mxu0 0.0
    %276 = vmatprep.mubr.f32.mxu0 0.0
    %277 = vmatmul.mubr.f32.gmra.mrb[0].mxu0 %v197
    %v278 = vpop.f32.mrb[0].mxu0
    %v279 = vadd.f32 0.0, %v278
    %v280 = vpop.f32.mrb[0].mxu0
    %v281 = vadd.f32 0.0, %v280
    %282 = vdwg.mxu0
    %283 = vmatprep.subr.mxu0 %v210
    %284 = vmatpush1.msra.mxu0 %v207
    %285 = vmatprep.subr.mxu0 0.0
    %286 = vmatpush1.msra.mxu0 0.0
    %287 = vmatprep.subr.mxu0 0.0
    %288 = vmatpush1.msra.mxu0 0.0
    %289 = vmatprep.subr.mxu0 0.0
    %290 = vmatpush1.msra.mxu0 0.0
    %291 = vmatprep.subr.mxu0 0.0
    %292 = vmatpush1.msra.mxu0 0.0
    %293 = vmatprep.subr.mxu0 0.0
    %294 = vmatpush1.msra.mxu0 0.0
    %295 = vmatprep.subr.mxu0 0.0
    %296 = vmatpush1.msra.mxu0 0.0
    %297 = vmatprep.subr.mxu0 0.0
    %298 = vmatpush1.msra.mxu0 0.0
    %299 = vmatprep.subr.mxu0 0.0
    %300 = vmatpush1.msra.mxu0 0.0
    %301 = vmatprep.subr.mxu0 0.0
    %302 = vmatpush1.msra.mxu0 0.0
    %303 = vmatprep.subr.mxu0 0.0
    %304 = vmatpush1.msra.mxu0 0.0
    %305 = vmatprep.subr.mxu0 0.0
    %306 = vmatpush1.msra.mxu0 0.0
    %307 = vmatprep.subr.mxu0 0.0
    %308 = vmatpush1.msra.mxu0 0.0
    %309 = vmatprep.subr.mxu0 0.0
    %310 = vmatpush1.msra.mxu0 0.0
    %311 = vmatprep.subr.mxu0 0.0
    %312 = vmatpush1.msra.mxu0 0.0
    %313 = vmatprep.subr.mxu0 0.0
    %314 = vmatpush1.msra.mxu0 0.0
    %315 = vmatprep.subr.mxu0 0.0
    %316 = vmatpush1.msra.mxu0 0.0
    %317 = vmatprep.subr.mxu0 0.0
    %318 = vmatpush1.msra.mxu0 0.0
    %319 = vmatprep.subr.mxu0 0.0
    %320 = vmatpush1.msra.mxu0 0.0
    %321 = vmatprep.subr.mxu0 0.0
    %322 = vmatpush1.msra.mxu0 0.0
    %323 = vmatprep.subr.mxu0 0.0
    %324 = vmatpush1.msra.mxu0 0.0
    %325 = vmatprep.subr.mxu0 0.0
    %326 = vmatpush1.msra.mxu0 0.0
    %327 = vmatprep.subr.mxu0 0.0
    %328 = vmatpush1.msra.mxu0 0.0
    %329 = vmatprep.subr.mxu0 0.0
    %330 = vmatpush1.msra.mxu0 0.0
    %331 = vmatprep.subr.mxu0 0.0
    %332 = vmatpush1.msra.mxu0 0.0
    %333 = vmatprep.subr.mxu0 0.0
    %334 = vmatpush1.msra.mxu0 0.0
    %335 = vmatprep.subr.mxu0 0.0
    %336 = vmatpush1.msra.mxu0 0.0
    %337 = vmatprep.subr.mxu0 0.0
    %338 = vmatpush1.msra.mxu0 0.0
    %339 = vmatprep.subr.mxu0 0.0
    %340 = vmatpush1.msra.mxu0 0.0
    %341 = vmatprep.subr.mxu0 0.0
    %342 = vmatpush1.msra.mxu0 0.0
    %343 = vmatprep.subr.mxu0 0.0
    %344 = vmatpush1.msra.mxu0 0.0
    %345 = vmatprep.subr.mxu0 0.0
    %346 = vmatpush1.msra.mxu0 0.0
    %347 = vmatprep.mubr.f32.mxu0 0.0
    %348 = vmatmul.mubr.f32.gmra.mrb[0].mxu0 %v197
    %v349 = vpop.f32.mrb[0].mxu0
    %v350 = vadd.f32 0.0, %v349
    %v351 = vpop.f32.mrb[0].mxu0
    %v352 = vadd.f32 0.0, %v351
    %353 = vdwg.mxu0
    %vm354 = vcmask 130048
    %v356 = vsel %vm354, %v43, 0
    %358 = vmatprep.subr.mxu0 %v46
    %359 = vmatpush1.msra.mxu0 %v45
    %360 = vmatprep.subr.mxu0 %v50
    %361 = vmatpush1.msra.mxu0 %v49
    %362 = vmatprep.subr.mxu0 0.0
    %363 = vmatpush1.msra.mxu0 0.0
    %364 = vmatprep.subr.mxu0 0.0
    %365 = vmatpush1.msra.mxu0 0.0
    %366 = vmatprep.subr.mxu0 0.0
    %367 = vmatpush1.msra.mxu0 0.0
    %368 = vmatprep.subr.mxu0 0.0
    %369 = vmatpush1.msra.mxu0 0.0
    %370 = vmatprep.subr.mxu0 0.0
    %371 = vmatpush1.msra.mxu0 0.0
    %372 = vmatprep.subr.mxu0 0.0
    %373 = vmatpush1.msra.mxu0 0.0
    %374 = vmatprep.subr.mxu0 0.0
    %375 = vmatpush1.msra.mxu0 0.0
    %376 = vmatprep.subr.mxu0 0.0
    %377 = vmatpush1.msra.mxu0 0.0
    %378 = vmatprep.subr.mxu0 0.0
    %379 = vmatpush1.msra.mxu0 0.0
    %380 = vmatprep.subr.mxu0 0.0
    %381 = vmatpush1.msra.mxu0 0.0
    %382 = vmatprep.subr.mxu0 0.0
    %383 = vmatpush1.msra.mxu0 0.0
    %384 = vmatprep.subr.mxu0 0.0
    %385 = vmatpush1.msra.mxu0 0.0
    %386 = vmatprep.subr.mxu0 0.0
    %387 = vmatpush1.msra.mxu0 0.0
    %388 = vmatprep.subr.mxu0 0.0
    %389 = vmatpush1.msra.mxu0 0.0
    %390 = vmatprep.subr.mxu0 0.0
    %391 = vmatpush1.msra.mxu0 0.0
    %392 = vmatprep.subr.mxu0 0.0
    %393 = vmatpush1.msra.mxu0 0.0
    %394 = vmatprep.subr.mxu0 0.0
    %395 = vmatpush1.msra.mxu0 0.0
    %396 = vmatprep.subr.mxu0 0.0
    %397 = vmatpush1.msra.mxu0 0.0
    %398 = vmatprep.subr.mxu0 0.0
    %399 = vmatpush1.msra.mxu0 0.0
    %400 = vmatprep.subr.mxu0 0.0
    %401 = vmatpush1.msra.mxu0 0.0
    %402 = vmatprep.subr.mxu0 0.0
    %403 = vmatpush1.msra.mxu0 0.0
    %404 = vmatprep.subr.mxu0 0.0
    %405 = vmatpush1.msra.mxu0 0.0
    %406 = vmatprep.subr.mxu0 0.0
    %407 = vmatpush1.msra.mxu0 0.0
    %408 = vmatprep.subr.mxu0 0.0
    %409 = vmatpush1.msra.mxu0 0.0
    %410 = vmatprep.subr.mxu0 0.0
    %411 = vmatpush1.msra.mxu0 0.0
    %412 = vmatprep.subr.mxu0 0.0
    %413 = vmatpush1.msra.mxu0 0.0
    %414 = vmatprep.subr.mxu0 0.0
    %415 = vmatpush1.msra.mxu0 0.0
    %416 = vmatprep.subr.mxu0 0.0
    %417 = vmatpush1.msra.mxu0 0.0
    %418 = vmatprep.subr.mxu0 0.0
    %419 = vmatpush1.msra.mxu0 0.0
    %420 = vmatprep.subr.mxu0 0.0
    %421 = vmatpush1.msra.mxu0 0.0
    %422 = vmatprep.mubr.f32.mxu0 0.0
    %423 = vmatmul.mubr.f32.gmra.mrb[0].mxu0 %v356
    %v424 = vpop.f32.mrb[0].mxu0
    %v425 = vadd.f32 %v279, %v424
    %v426 = vpop.f32.mrb[0].mxu0
    %v427 = vadd.f32 %v281, %v426
    %428 = vdwg.mxu0
    %429 = vmatprep.subr.mxu0 %v48
    %430 = vmatpush1.msra.mxu0 %v47
    %431 = vmatprep.subr.mxu0 %v52
    %432 = vmatpush1.msra.mxu0 %v51
    %433 = vmatprep.subr.mxu0 0.0
    %434 = vmatpush1.msra.mxu0 0.0
    %435 = vmatprep.subr.mxu0 0.0
    %436 = vmatpush1.msra.mxu0 0.0
    %437 = vmatprep.subr.mxu0 0.0
    %438 = vmatpush1.msra.mxu0 0.0
    %439 = vmatprep.subr.mxu0 0.0
    %440 = vmatpush1.msra.mxu0 0.0
    %441 = vmatprep.subr.mxu0 0.0
    %442 = vmatpush1.msra.mxu0 0.0
    %443 = vmatprep.subr.mxu0 0.0
    %444 = vmatpush1.msra.mxu0 0.0
    %445 = vmatprep.subr.mxu0 0.0
    %446 = vmatpush1.msra.mxu0 0.0
    %447 = vmatprep.subr.mxu0 0.0
    %448 = vmatpush1.msra.mxu0 0.0
    %449 = vmatprep.subr.mxu0 0.0
    %450 = vmatpush1.msra.mxu0 0.0
    %451 = vmatprep.subr.mxu0 0.0
    %452 = vmatpush1.msra.mxu0 0.0
    %453 = vmatprep.subr.mxu0 0.0
    %454 = vmatpush1.msra.mxu0 0.0
    %455 = vmatprep.subr.mxu0 0.0
    %456 = vmatpush1.msra.mxu0 0.0
    %457 = vmatprep.subr.mxu0 0.0
    %458 = vmatpush1.msra.mxu0 0.0
    %459 = vmatprep.subr.mxu0 0.0
    %460 = vmatpush1.msra.mxu0 0.0
    %461 = vmatprep.subr.mxu0 0.0
    %462 = vmatpush1.msra.mxu0 0.0
    %463 = vmatprep.subr.mxu0 0.0
    %464 = vmatpush1.msra.mxu0 0.0
    %465 = vmatprep.subr.mxu0 0.0
    %466 = vmatpush1.msra.mxu0 0.0
    %467 = vmatprep.subr.mxu0 0.0
    %468 = vmatpush1.msra.mxu0 0.0
    %469 = vmatprep.subr.mxu0 0.0
    %470 = vmatpush1.msra.mxu0 0.0
    %471 = vmatprep.subr.mxu0 0.0
    %472 = vmatpush1.msra.mxu0 0.0
    %473 = vmatprep.subr.mxu0 0.0
    %474 = vmatpush1.msra.mxu0 0.0
    %475 = vmatprep.subr.mxu0 0.0
    %476 = vmatpush1.msra.mxu0 0.0
    %477 = vmatprep.subr.mxu0 0.0
    %478 = vmatpush1.msra.mxu0 0.0
    %479 = vmatprep.subr.mxu0 0.0
    %480 = vmatpush1.msra.mxu0 0.0
    %481 = vmatprep.subr.mxu0 0.0
    %482 = vmatpush1.msra.mxu0 0.0
    %483 = vmatprep.subr.mxu0 0.0
    %484 = vmatpush1.msra.mxu0 0.0
    %485 = vmatprep.subr.mxu0 0.0
    %486 = vmatpush1.msra.mxu0 0.0
    %487 = vmatprep.subr.mxu0 0.0
    %488 = vmatpush1.msra.mxu0 0.0
    %489 = vmatprep.subr.mxu0 0.0
    %490 = vmatpush1.msra.mxu0 0.0
    %491 = vmatprep.subr.mxu0 0.0
    %492 = vmatpush1.msra.mxu0 0.0
    %493 = vmatprep.mubr.f32.mxu0 0.0
    %494 = vmatmul.mubr.f32.gmra.mrb[0].mxu0 %v356
    %v495 = vpop.f32.mrb[0].mxu0
    %v496 = vadd.f32 %v350, %v495
    %v497 = vpop.f32.mrb[0].mxu0
    %v498 = vadd.f32 %v352, %v497
    %499 = vdwg.mxu0
    %v501 = vlaneseq
    %v502 = vshrl.u32 %v501, 7
    %v503 = vsub.s32 0, %v502
    %v504 = vrot.slane %v185, %v503
    %v505 = vlaneseq
    %v506 = vshrl.u32 %v505, 7
    %v507 = vsub.s32 1, %v506
    %v508 = vrot.slane %v185, %v507
    %v509 = vlaneseq
    %v510 = vshrl.u32 %v509, 7
    %v511 = vsub.s32 2, %v510
    %v512 = vrot.slane %v185, %v511
    %v513 = vlaneseq
    %v514 = vshrl.u32 %v513, 7
    %v515 = vsub.s32 3, %v514
    %v516 = vrot.slane %v185, %v515
    %v521 = vadd.f32 %v425, %v504
    %v522 = vadd.f32 %v427, %v508
    %v523 = vadd.f32 %v496, %v512
    %v524 = vadd.f32 %v498, %v516
    %v525 = vmax.f32 %v521, 0.0
    %v526 = vmax.f32 %v522, 0.0
    %v527 = vmax.f32 %v523, 0.0
    %v528 = vmax.f32 %v524, 0.0
    %v530 = vlaneseq
    %v531 = vshrl.u32 %v530, 7
    %v532 = vsub.s32 0, %v531
    %v533 = vrot.slane %v187, %v532
    %v534 = vlaneseq
    %v535 = vshrl.u32 %v534, 7
    %v536 = vsub.s32 1, %v535
    %v537 = vrot.slane %v187, %v536
    %540 = vmatprep.subr.mxu0 %v58
    %541 = vmatpush1.msra.mxu0 %v57
    %542 = vmatprep.subr.mxu0 %v60
    %543 = vmatpush1.msra.mxu0 %v59
    %544 = vmatprep.subr.mxu0 %v62
    %545 = vmatpush1.msra.mxu0 %v61
    %546 = vmatprep.subr.mxu0 %v64
    %547 = vmatpush1.msra.mxu0 %v63
    %548 = vmatprep.subr.mxu0 %v66
    %549 = vmatpush1.msra.mxu0 %v65
    %550 = vmatprep.subr.mxu0 %v68
    %551 = vmatpush1.msra.mxu0 %v67
    %552 = vmatprep.subr.mxu0 %v70
    %553 = vmatpush1.msra.mxu0 %v69
    %554 = vmatprep.subr.mxu0 %v72
    %555 = vmatpush1.msra.mxu0 %v71
    %556 = vmatprep.subr.mxu0 %v74
    %557 = vmatpush1.msra.mxu0 %v73
    %558 = vmatprep.subr.mxu0 %v76
    %559 = vmatpush1.msra.mxu0 %v75
    %560 = vmatprep.subr.mxu0 %v78
    %561 = vmatpush1.msra.mxu0 %v77
    %562 = vmatprep.subr.mxu0 %v80
    %563 = vmatpush1.msra.mxu0 %v79
    %564 = vmatprep.subr.mxu0 %v82
    %565 = vmatpush1.msra.mxu0 %v81
    %566 = vmatprep.subr.mxu0 %v84
    %567 = vmatpush1.msra.mxu0 %v83
    %568 = vmatprep.subr.mxu0 %v86
    %569 = vmatpush1.msra.mxu0 %v85
    %570 = vmatprep.subr.mxu0 %v88
    %571 = vmatpush1.msra.mxu0 %v87
    %572 = vmatprep.subr.mxu0 %v90
    %573 = vmatpush1.msra.mxu0 %v89
    %574 = vmatprep.subr.mxu0 %v92
    %575 = vmatpush1.msra.mxu0 %v91
    %576 = vmatprep.subr.mxu0 %v94
    %577 = vmatpush1.msra.mxu0 %v93
    %578 = vmatprep.subr.mxu0 %v96
    %579 = vmatpush1.msra.mxu0 %v95
    %580 = vmatprep.subr.mxu0 %v98
    %581 = vmatpush1.msra.mxu0 %v97
    %582 = vmatprep.subr.mxu0 %v100
    %583 = vmatpush1.msra.mxu0 %v99
    %584 = vmatprep.subr.mxu0 %v102
    %585 = vmatpush1.msra.mxu0 %v101
    %586 = vmatprep.subr.mxu0 %v104
    %587 = vmatpush1.msra.mxu0 %v103
    %588 = vmatprep.subr.mxu0 %v106
    %589 = vmatpush1.msra.mxu0 %v105
    %590 = vmatprep.subr.mxu0 %v108
    %591 = vmatpush1.msra.mxu0 %v107
    %592 = vmatprep.subr.mxu0 %v110
    %593 = vmatpush1.msra.mxu0 %v109
    %594 = vmatprep.subr.mxu0 %v112
    %595 = vmatpush1.msra.mxu0 %v111
    %596 = vmatprep.subr.mxu0 %v114
    %597 = vmatpush1.msra.mxu0 %v113
    %598 = vmatprep.subr.mxu0 %v116
    %599 = vmatpush1.msra.mxu0 %v115
    %600 = vmatprep.subr.mxu0 %v118
    %601 = vmatpush1.msra.mxu0 %v117
    %602 = vmatprep.subr.mxu0 %v120
    %603 = vmatpush1.msra.mxu0 %v119
    %604 = vmatprep.mubr.f32.mxu0 %v526
    %605 = vmatmul.mubr.f32.gmra.mrb[0].mxu0 %v525
    %v606 = vpop.f32.mrb[0].mxu0
    %v607 = vadd.f32 %v533, %v606
    %v608 = vpop.f32.mrb[0].mxu0
    %v609 = vadd.f32 %v537, %v608
    %610 = vdwg.mxu0
    %v611 = vmax.f32 %v607, 0.0
    %v612 = vmax.f32 %v609, 0.0
    %v614 = vlaneseq
    %v615 = vshrl.u32 %v614, 7
    %v616 = vsub.s32 0, %v615
    %v617 = vrot.slane %v189, %v616
    %v618 = vlaneseq
    %v619 = vshrl.u32 %v618, 7
    %v620 = vsub.s32 1, %v619
    %v621 = vrot.slane %v189, %v620
    %624 = vmatprep.subr.mxu0 %v122
    %625 = vmatpush1.msra.mxu0 %v121
    %626 = vmatprep.subr.mxu0 %v124
    %627 = vmatpush1.msra.mxu0 %v123
    %628 = vmatprep.subr.mxu0 %v126
    %629 = vmatpush1.msra.mxu0 %v125
    %630 = vmatprep.subr.mxu0 %v128
    %631 = vmatpush1.msra.mxu0 %v127
    %632 = vmatprep.subr.mxu0 %v130
    %633 = vmatpush1.msra.mxu0 %v129
    %634 = vmatprep.subr.mxu0 %v132
    %635 = vmatpush1.msra.mxu0 %v131
    %636 = vmatprep.subr.mxu0 %v134
    %637 = vmatpush1.msra.mxu0 %v133
    %638 = vmatprep.subr.mxu0 %v136
    %639 = vmatpush1.msra.mxu0 %v135
    %640 = vmatprep.subr.mxu0 %v138
    %641 = vmatpush1.msra.mxu0 %v137
    %642 = vmatprep.subr.mxu0 %v140
    %643 = vmatpush1.msra.mxu0 %v139
    %644 = vmatprep.subr.mxu0 %v142
    %645 = vmatpush1.msra.mxu0 %v141
    %646 = vmatprep.subr.mxu0 %v144
    %647 = vmatpush1.msra.mxu0 %v143
    %648 = vmatprep.subr.mxu0 %v146
    %649 = vmatpush1.msra.mxu0 %v145
    %650 = vmatprep.subr.mxu0 %v148
    %651 = vmatpush1.msra.mxu0 %v147
    %652 = vmatprep.subr.mxu0 %v150
    %653 = vmatpush1.msra.mxu0 %v149
    %654 = vmatprep.subr.mxu0 %v152
    %655 = vmatpush1.msra.mxu0 %v151
    %656 = vmatprep.subr.mxu0 %v154
    %657 = vmatpush1.msra.mxu0 %v153
    %658 = vmatprep.subr.mxu0 %v156
    %659 = vmatpush1.msra.mxu0 %v155
    %660 = vmatprep.subr.mxu0 %v158
    %661 = vmatpush1.msra.mxu0 %v157
    %662 = vmatprep.subr.mxu0 %v160
    %663 = vmatpush1.msra.mxu0 %v159
    %664 = vmatprep.subr.mxu0 %v162
    %665 = vmatpush1.msra.mxu0 %v161
    %666 = vmatprep.subr.mxu0 %v164
    %667 = vmatpush1.msra.mxu0 %v163
    %668 = vmatprep.subr.mxu0 %v166
    %669 = vmatpush1.msra.mxu0 %v165
    %670 = vmatprep.subr.mxu0 %v168
    %671 = vmatpush1.msra.mxu0 %v167
    %672 = vmatprep.subr.mxu0 %v170
    %673 = vmatpush1.msra.mxu0 %v169
    %674 = vmatprep.subr.mxu0 %v172
    %675 = vmatpush1.msra.mxu0 %v171
    %676 = vmatprep.subr.mxu0 %v174
    %677 = vmatpush1.msra.mxu0 %v173
    %678 = vmatprep.subr.mxu0 %v176
    %679 = vmatpush1.msra.mxu0 %v175
    %680 = vmatprep.subr.mxu0 %v178
    %681 = vmatpush1.msra.mxu0 %v177
    %682 = vmatprep.subr.mxu0 %v180
    %683 = vmatpush1.msra.mxu0 %v179
    %684 = vmatprep.subr.mxu0 %v182
    %685 = vmatpush1.msra.mxu0 %v181
    %686 = vmatprep.subr.mxu0 %v184
    %687 = vmatpush1.msra.mxu0 %v183
    %688 = vmatprep.mubr.f32.mxu0 %v528
    %689 = vmatmul.mubr.f32.gmra.mrb[0].mxu0 %v527
    %v690 = vpop.f32.mrb[0].mxu0
    %v691 = vadd.f32 %v617, %v690
    %v692 = vpop.f32.mrb[0].mxu0
    %v693 = vadd.f32 %v621, %v692
    %694 = vdwg.mxu0
    %v695 = vmax.f32 %v691, 0.0
    %v696 = vmax.f32 %v693, 0.0
    %v698 = vlaneseq
    %v699 = vshrl.u32 %v698, 7
    %v700 = vsub.s32 0, %v699
    %v701 = vrot.slane %v191, %v700
    %v702 = vlaneseq
    %v703 = vshrl.u32 %v702, 7
    %v704 = vsub.s32 1, %v703
    %v705 = vrot.slane %v191, %v704
    %v708 = vmul.f32 %v611, %v701
    %v709 = vmul.f32 %v612, %v705
    %v710 = vadd.f32 %v708, %v709
    %711 = vadd.xlane.f32.xlu0 %v710
    %v712 = vpop.xlane.xlu0 %711
    %v714 = vlaneseq
    %v715 = vshrl.u32 %v714, 7
    %v716 = vsub.s32 0, %v715
    %v717 = vrot.slane %v193, %v716
    %v718 = vlaneseq
    %v719 = vshrl.u32 %v718, 7
    %v720 = vsub.s32 1, %v719
    %v721 = vrot.slane %v193, %v720
    %v724 = vmul.f32 %v695, %v717
    %v725 = vmul.f32 %v696, %v721
    %v726 = vadd.f32 %v724, %v725
    %727 = vadd.xlane.f32.xlu0 %v726
    %v728 = vpop.xlane.xlu0 %727
    %vm729 = vcmask 7168
    %v730 = vsel %vm729, %v712, %v728
    %v731 = vlaneseq
    %v732 = vshrl.u32 %v731, 7
    %v733 = vsub.s32 0, %v732
    %v734 = vrot.slane %v194, %v733
    %v735 = vadd.f32 %v730, %v734
    %vm736 = vcmask 15360
    %737 = vst.msk [vmem:[%s4] sm:$0xff] %vm736, %v735
    // Predicated region
    $region26: #{critic_forward.1} parent=1 // pred_check
      _
    $region27: #{critic_forward.1} parent=1 // pred_check_branch
      %739 = sbr.rel (0) target = $region29
    $region28: #{critic_forward.1} parent=1 // pred_region
      _
    $region29: #{critic_forward.1} parent=1 // pred_fallthru
      _
    // Predicated region
    $region30: #{critic_forward.1} parent=1 // pred_check
      _
    $region31: #{critic_forward.1} parent=1 // pred_check_branch
      %741 = sbr.rel (0) target = $region33
    $region32: #{critic_forward.1} parent=1 // pred_region
      _
    $region33: #{critic_forward.1} parent=1 // pred_fallthru
      _
    %742 = vsyncpa [#allocation3], 1
    %743 = vsyncpa [#allocation5], 1

</llo_original>
